<compile_context>
chip_gen: v7x
topology: tpu7x:2x2x1
jax: 0.10.0
libtpu: 0.0.40
codegen_flags: <defaults>
</compile_context>

<pallas_src>
import math

import jax
import jax.numpy as jnp
from jax.experimental import pallas as pl
from jax.experimental.pallas import tpu as pltpu


def _make_kernel(d):
    """Kernel factory closing over the static feature dim D."""

    def perceptron_kernel(x_ref, w_ref, b_ref, o_ref):
        # x_ref: (TILE_B, D) in VMEM (pipelined per grid step, f32 or bf16)
        # w_ref: (1, D) in VMEM (resident -- constant index_map)
        # b_ref: (1,) f32 in SMEM (scalar)
        x = x_ref[...].astype(jnp.float32)
        w = w_ref[...].astype(jnp.float32)          # broadcasts over rows

        if d % 128 == 0 and d > 128:
            # Chunked VPU accumulation: one (TILE_B, 128) f32 accumulator,
            # a single cross-lane reduce at the end of the tile (keeps the
            # 2 XLU slots off the per-vreg critical path on v7x).
            acc = x[:, 0:128] * w[:, 0:128]
            for c in range(1, d // 128):
                s = c * 128
                acc = acc + x[:, s:s + 128] * w[:, s:s + 128]
            y = jnp.sum(acc, axis=-1, keepdims=True)        # (TILE_B, 1)
        else:
            # Small D: a single lane reduce is already cheap.
            y = jnp.sum(x * w, axis=-1, keepdims=True)      # (TILE_B, 1)

        o_ref[...] = (y + b_ref[0]).astype(o_ref.dtype)

    return perceptron_kernel


def _choose_tile_b(B, D, itemsize):
    """Batch tile: multiple of 8 rows, ~8 MiB per x buffer (x2 double-buffer)."""
    lane_padded_d = max(((D + 127) // 128) * 128, 128)
    per_buffer_budget = 8 * 1024 * 1024
    rows = per_buffer_budget // (lane_padded_d * itemsize)
    rows = max(8, (rows // 8) * 8)
    b_padded = ((B + 7) // 8) * 8
    return min(rows, b_padded)


def _candidate_dimension_semantics():
    """Prefer CORE_PARALLEL on multi-TensorCore chips (v7x); fall back safely."""
    cands = []
    try:
        kind = jax.devices()[0].device_kind.lower()
    except Exception:
        kind = ""
    if "v7" in kind or "tpu7" in kind:
        cands.append((pltpu.CORE_PARALLEL,))
    cands.append(("parallel",))
    return cands


def perceptron_forward(x, weight, bias, *, store_dtype=None, force_pallas=False):
    """x: (B, D), weight: (1, D) (PyTorch layout), bias: (1,). Returns (B, 1) f32."""
    B, D = x.shape

    # Tiny-shape fast path: pallas_call launch + one grid step dominates here.
    if not force_pallas and B * D * jnp.dtype(x.dtype).itemsize < 256 * 1024:
        return (x @ weight.T + bias).astype(jnp.float32)

    # Optional reduced-precision HBM storage (f32 accumulation in-kernel).
    xw_dtype = jnp.dtype(store_dtype) if store_dtype is not None else jnp.dtype(x.dtype)
    x_s = x.astype(xw_dtype)
    w_s = weight.astype(xw_dtype)
    b_s = bias.astype(jnp.float32)

    tile_b = _choose_tile_b(B, D, xw_dtype.itemsize)
    num_tiles = pl.cdiv(B, tile_b)
    kernel = _make_kernel(D)

    def _call(dim_sem):
        return pl.pallas_call(
            kernel,
            out_shape=jax.ShapeDtypeStruct((B, 1), jnp.float32),
            grid=(num_tiles,),
            in_specs=[
                pl.BlockSpec((tile_b, D), lambda i: (i, 0)),           # streamed x rows
                pl.BlockSpec((1, D), lambda i: (0, 0)),                # weight, resident
                pl.BlockSpec(memory_space=pltpu.MemorySpace.SMEM),     # bias scalar
            ],
            out_specs=pl.BlockSpec((tile_b, 1), lambda i: (i, 0)),
            compiler_params=pltpu.CompilerParams(
                dimension_semantics=dim_sem,
                vmem_limit_bytes=32 * 1024 * 1024,
            ),
        )(x_s, w_s, b_s)

    last_err = None
    for dim_sem in _candidate_dimension_semantics():
        try:
            return _call(dim_sem)
        except Exception as e:                      # e.g. CORE_PARALLEL unsupported
            last_err = e
            continue
    raise last_err


if __name__ == "__main__":
    # Small shapes consistent with the module: batch=8, input_dim=32.
    B, D = 8, 32

    key = jax.random.PRNGKey(0)
    kx, kw, kb = jax.random.split(key, 3)

    x = jax.random.normal(kx, (B, D), dtype=jnp.float32)

    # Deterministic nn.Linear-style init: U(-1/sqrt(D), 1/sqrt(D)).
    bound = 1.0 / math.sqrt(D)
    weight = jax.random.uniform(kw, (1, D), minval=-bound, maxval=bound,
                                dtype=jnp.float32)
    bias = jax.random.uniform(kb, (1,), minval=-bound, maxval=bound,
                              dtype=jnp.float32)

    ref = x @ weight.T + bias

    # 1) Pallas kernel path (forced past the tiny-shape fast path).
    out = jax.block_until_ready(perceptron_forward(x, weight, bias,
                                                   force_pallas=True))
    assert out.shape == (B, 1)
    assert jnp.allclose(out, ref, atol=1e-5, rtol=1e-5)

    # 2) Ragged batch (B not a multiple of 8) exercises the masked last-block
    #    stores that replaced the old jnp.pad round-trip.
    B2 = 13
    x2 = jax.random.normal(jax.random.PRNGKey(1), (B2, D), dtype=jnp.float32)
    out2 = jax.block_until_ready(perceptron_forward(x2, weight, bias,
                                                    force_pallas=True))
    ref2 = x2 @ weight.T + bias
    assert out2.shape == (B2, 1)
    assert jnp.allclose(out2, ref2, atol=1e-5, rtol=1e-5)

    # 3) Optional bf16-storage path (halves HBM traffic; f32 accumulation).
    out3 = jax.block_until_ready(perceptron_forward(x, weight, bias,
                                                    store_dtype=jnp.bfloat16,
                                                    force_pallas=True))
    assert jnp.allclose(out3, ref, atol=5e-2, rtol=5e-2)

    # 4) Default auto path: tiny shapes route to the plain-XLA fast path.
    out4 = jax.block_until_ready(perceptron_forward(x, weight, bias))
    assert jnp.allclose(out4, ref, atol=1e-5, rtol=1e-5)

    print("KERNEL_OK")
</pallas_src>

<mosaic_0001>
module attributes {stable_mosaic.version = 11 : i64} {
  func.func @perceptron_kernel(%arg0: i32, %arg1: memref<8x32xf32, #tpu.memory_space<vmem>>, %arg2: memref<1x32xf32, #tpu.memory_space<vmem>>, %arg3: memref<1xf32, #tpu.memory_space<smem>>, %arg4: memref<8x1xf32, #tpu.memory_space<vmem>>) attributes {dimension_semantics = [#tpu.dimension_semantics<parallel>], iteration_bounds = array<i64: 1>, scalar_prefetch = 0 : i64, scratch_operands = 0 : i64, tpu.core_type = #tpu.core_type<tc>, window_params = [{transform_indices = @transform_0, window_bounds = array<i64: 8, 32>}, {pipeline_mode = #tpu.pipeline_mode<synchronous>, transform_indices = @transform_1, window_bounds = array<i64: 1, 32>}, {transform_indices = @transform_2, window_bounds = array<i64: 1>}, {transform_indices = @transform_3, window_bounds = array<i64: 8, 1>}]} {
    %c0 = arith.constant 0 : index
    %c0_0 = arith.constant 0 : index
    %0 = vector.load %arg1[%c0, %c0_0] : memref<8x32xf32, #tpu.memory_space<vmem>>, vector<8x32xf32>
    %c0_1 = arith.constant 0 : index
    %c0_2 = arith.constant 0 : index
    %1 = vector.load %arg2[%c0_1, %c0_2] : memref<1x32xf32, #tpu.memory_space<vmem>>, vector<1x32xf32>
    %2 = vector.broadcast %1 : vector<1x32xf32> to vector<8x32xf32>
    %3 = arith.mulf %0, %2 : vector<8x32xf32>
    %cst = arith.constant dense<0.000000e+00> : vector<8xf32>
    %4 = vector.multi_reduction <add>, %3, %cst [1] : vector<8x32xf32> to vector<8xf32>
    %5 = vector.shape_cast %4 : vector<8xf32> to vector<8x1xf32>
    %c0_3 = arith.constant 0 : index
    %6 = memref.load %arg3[%c0_3] : memref<1xf32, #tpu.memory_space<smem>>
    %7 = vector.broadcast %6 : f32 to vector<8x1xf32>
    %8 = arith.addf %5, %7 : vector<8x1xf32>
    %c0_4 = arith.constant 0 : index
    %c0_5 = arith.constant 0 : index
    %9 = vector.load %arg4[%c0_4, %c0_5] : memref<8x1xf32, #tpu.memory_space<vmem>>, vector<8x1xf32>
    tpu.vector_store %arg4[%c0_4, %c0_5], %8 {strides = array<i32>} : memref<8x1xf32, #tpu.memory_space<vmem>>, vector<8x1xf32>,
    return
  }
  func.func @transform_0(%arg0: i32) -> (i32, i32) {
    %c0_i32 = arith.constant 0 : i32
    %c0_i32_0 = arith.constant 0 : i32
    return %arg0, %c0_i32 : i32, i32
  }
  func.func @transform_1(%arg0: i32) -> (i32, i32) {
    %c0_i32 = arith.constant 0 : i32
    %c0_i32_0 = arith.constant 0 : i32
    %c0_i32_1 = arith.constant 0 : i32
    return %c0_i32, %c0_i32_0 : i32, i32
  }
  func.func @transform_2(%arg0: i32) -> i32 {
    %c0_i32 = arith.constant 0 : i32
    %c0_i32_0 = arith.constant 0 : i32
    return %c0_i32 : i32
  }
  func.func @transform_3(%arg0: i32) -> (i32, i32) {
    %c0_i32 = arith.constant 0 : i32
    %c0_i32_0 = arith.constant 0 : i32
    return %arg0, %c0_i32 : i32, i32
  }
}

</mosaic_0001>

<llo_original>
// kernel: tpu_custom_call.1
$region0: #{tpu_custom_call.1}
  #allocation0 [shape = 'u32[]', space=smem, size = 0x4, offset = 0x4, fixed_abs, tag = 'smem constant byte address 0x4 - core index']
  #allocation1 [shape = 'u32[144,128]{1,0:T(1,128)}', space=vmem, size = 0x12000, scoped, tag = 'internal scratch']
  #allocation2 [shape = 'f32[1]{0:T(128)S(6)}', space=smem, size = 0x200, scoped, tag = 'scoped memory for tpu_custom_call.1']
  %s0 = inlined_call_operand.hbm [shape: f32[8,32], index: 0, kind: input, shape index: {}]
  %s1 = inlined_call_operand.vmem [shape: f32[1,32], index: 1, kind: input, shape index: {}]
  %s2 = inlined_call_operand.<no memory space> [shape: f32[1], index: 2, kind: input, shape index: {}]
  %s3 = inlined_call_operand.vmem [shape: f32[8,1], index: 3, kind: output, shape index: {}]
  %s4 = sld [smem:[#allocation0]]
  $region26: #{tpu_custom_call.1} parent=0
    _
  %s6 = ssub.s32 1, %s4
  %s7 = scalar_select 0, %s6, %s4
  %8 = sst [smem:[#allocation2]] %s2
  $region1: #{tpu_custom_call.1} parent=0
    #allocation3 [shape = 'u8[4096]{0}', space=vmem, size = 0x1000, scoped, tag = 'input window, operand 0, single buffered']
    #allocation4 [shape = 's32[1]{0}', space=sflag, size = 0x4, scoped, tag = 'scoped memory for tpu_custom_call.1']
    %9 = vsyncpa [#allocation4], 0
    // Predicated region
    $region2: #{tpu_custom_call.1} parent=1 // pred_check
      _
    $region3: #{tpu_custom_call.1} parent=1 // pred_check_branch
      %11 = sbr.rel (0) target = $region5
    $region4: #{tpu_custom_call.1} parent=1 // pred_region
      %s13 = ssub.s32 128, 128
      %14 = vsyncadd [#allocation4], %s13
      %s16 = sshll.u32 [#allocation3], 4
      %s17 = int_to_ptr.vmem [resolvable:$true] %s16
      %19 = dma.hbm_to_vmem [thread:$0]  %s0, 128, %s17, [#allocation4]
    $region5: #{tpu_custom_call.1} parent=1 // pred_fallthru
      _
    // Predicated region
    $region6: #{tpu_custom_call.1} parent=1 // pred_check
      _
    $region7: #{tpu_custom_call.1} parent=1 // pred_check_branch
      %21 = sbr.rel (0) target = $region9
    $region8: #{tpu_custom_call.1} parent=1 // pred_region
      _
    $region9: #{tpu_custom_call.1} parent=1 // pred_fallthru
      _
    // Predicated region
    $region10: #{tpu_custom_call.1} parent=1 // pred_check
      _
    $region11: #{tpu_custom_call.1} parent=1 // pred_check_branch
      %23 = sbr.rel (0) target = $region13
    $region12: #{tpu_custom_call.1} parent=1 // pred_region
      _
    $region13: #{tpu_custom_call.1} parent=1 // pred_fallthru
      _
    // Predicated region
    $region14: #{tpu_custom_call.1} parent=1 // pred_check
      _
    $region15: #{tpu_custom_call.1} parent=1 // pred_check_branch
      %25 = sbr.rel (0) target = $region17
    $region16: #{tpu_custom_call.1} parent=1 // pred_region
      %26 = dma.done [#allocation4], 128
    $region17: #{tpu_custom_call.1} parent=1 // pred_fallthru
      _
    %v27 = vld [vmem:[#allocation3] sm:$0xff]
    %v28 = vld [vmem:[%s1] sm:$0x1]
    %v30 = vlaneseq
    %v31 = vshrl.u32 %v30, 7
    %v32 = vsub.s32 0, %v31
    %v33 = vrot.slane %v28, %v32
    %v35 = vmul.f32 %v27, %v33
    %vm36 = vcmask 261120
    %v37 = vsel %vm36, %v35, 0.0
    %38 = vadd.xlane.f32.xlu0 %v37
    %v39 = vpop.xlane.xlu0 %38
    %s40 = sld [smem:[#allocation2]]
    %v41 = vstv %s40
    %v42 = vadd.f32 %v39, %v41
    %vm43 = vcmask 7168
    %44 = vst.msk [vmem:[%s3] sm:$0xff] %vm43, %v42
    // Predicated region
    $region18: #{tpu_custom_call.1} parent=1 // pred_check
      _
    $region19: #{tpu_custom_call.1} parent=1 // pred_check_branch
      %46 = sbr.rel (0) target = $region21
    $region20: #{tpu_custom_call.1} parent=1 // pred_region
      _
    $region21: #{tpu_custom_call.1} parent=1 // pred_fallthru
      _
    // Predicated region
    $region22: #{tpu_custom_call.1} parent=1 // pred_check
      _
    $region23: #{tpu_custom_call.1} parent=1 // pred_check_branch
      %48 = sbr.rel (0) target = $region25
    $region24: #{tpu_custom_call.1} parent=1 // pred_region
      _
    $region25: #{tpu_custom_call.1} parent=1 // pred_fallthru
      _
    %49 = vsyncpa [#allocation4], 1

</llo_original>
